<compile_context>
chip_gen: v7x
topology: tpu7x:2x2x1
jax: 0.10.0
libtpu: 0.0.40
codegen_flags: <defaults>
</compile_context>

<pallas_src>
import math

import jax
import jax.numpy as jnp
from jax.experimental import pallas as pl
from jax.experimental.pallas import tpu as pltpu


def _identity_kernel(x_ref, o_ref):
    # Whole forward of TongueSegmentationModel: y = x.
    o_ref[...] = x_ref[...]


_LANE_WIDTHS = (4096, 2048, 1024, 512, 256, 128)  # widest lane-dense dim first
_MAX_TILE_BYTES = 8 << 20                          # ~8 MiB per tile


def _choose_layout(total: int, itemsize: int):
    """Pick a (rows, width) layout, a sublane-aligned row block and padded size."""
    # Sub-32-bit dtypes pack along sublanes: require 8 (f32), 16 (bf16),
    # 32 (int8/fp8) row alignment so packed sublanes are never split.
    sub_align = 8 * max(1, 4 // itemsize)

    width = next((w for w in _LANE_WIDTHS if total % w == 0), None)
    if width is None:
        # Awkward size: pad the flat array up to the next multiple of 128.
        # TODO(synk): the pad/slice adds an extra HBM pass; fallback only.
        width = 128
        padded = ((total + 127) // 128) * 128
    else:
        padded = total

    rows = padded // width
    max_block_rows = max(1, _MAX_TILE_BYTES // (width * itemsize))
    if rows <= max_block_rows:
        # Single full-extent row block (full-dim blocks are always legal,
        # even when not sublane-aligned).
        block_rows = rows
    else:
        block_rows = max(sub_align, (max_block_rows // sub_align) * sub_align)
        block_rows = min(block_rows, rows)
    return rows, width, block_rows, padded


def _identity_copy_pallas(x: jax.Array) -> jax.Array:
    """Test-only Pallas identity copy (lane-dense, large-tile, cdiv grid)."""
    orig_shape = x.shape
    total = int(math.prod(orig_shape)) if orig_shape else 1
    if total == 0:
        return x

    itemsize = jnp.dtype(x.dtype).itemsize
    rows, width, block_rows, padded = _choose_layout(total, itemsize)

    flat = jnp.reshape(x, (total,))
    if padded != total:
        flat = jnp.pad(flat, (0, padded - total))
    x2d = jnp.reshape(flat, (rows, width))

    # VMEM footprint: in + out, double-buffered, plus headroom.  Stays under
    # v7x's 64 MiB physical VMEM and above v5e's 16 MiB scoped default.
    tile_bytes = block_rows * width * itemsize
    vmem_limit = min(48 << 20, max(8 << 20, 4 * tile_bytes + (8 << 20)))

    grid = (pl.cdiv(rows, block_rows),)

    out2d = pl.pallas_call(
        _identity_kernel,
        out_shape=jax.ShapeDtypeStruct((rows, width), x2d.dtype),
        grid_spec=pltpu.PrefetchScalarGridSpec(
            num_scalar_prefetch=0,
            grid=grid,
            in_specs=[pl.BlockSpec((block_rows, width), lambda i: (i, 0))],
            out_specs=pl.BlockSpec((block_rows, width), lambda i: (i, 0)),
        ),
        cost_estimate=pl.CostEstimate(
            flops=0,
            transcendentals=0,
            bytes_accessed=2 * padded * itemsize,
        ),
        compiler_params=pltpu.CompilerParams(
            # TODO(synk): on v7x, pltpu.CORE_PARALLEL would shard this axis
            # across both TensorCores; kept "parallel" for portability.
            dimension_semantics=("parallel",),
            vmem_limit_bytes=vmem_limit,
        ),
    )(x2d)

    out = jnp.reshape(out2d, (padded,))
    if padded != total:
        out = out[:total]
    return jnp.reshape(out, orig_shape)


def tongue_segmentation_forward(x: jax.Array, *, force_kernel: bool = False) -> jax.Array:
    """TongueSegmentationModel.forward (identity).

    Fast path (default): return x — no pallas_call, no HBM traffic.
    `force_kernel=True` routes through the Pallas identity-copy kernel for
    testing the TPU lowering.
    """
    if not force_kernel:
        return x
    return _identity_copy_pallas(x)


if __name__ == "__main__":
    # Small NCHW input consistent with an image-segmentation style module.
    key = jax.random.PRNGKey(0)
    x = jax.random.normal(key, (2, 4, 16, 16), dtype=jnp.float32)

    # Production path: pure identity, no kernel launched.
    y_fast = jax.block_until_ready(tongue_segmentation_forward(x))
    assert y_fast.shape == x.shape and y_fast.dtype == x.dtype
    assert bool(jnp.all(y_fast == x))

    # Kernel path (testing flag): lane-dense tiled copy through Pallas.
    y = jax.block_until_ready(tongue_segmentation_forward(x, force_kernel=True))
    assert y.shape == x.shape and y.dtype == x.dtype
    assert bool(jnp.all(y == x))

    # Awkward (non-128-divisible) element count exercises the bounded fallback.
    x_odd = jax.random.normal(jax.random.PRNGKey(0), (3, 5, 7), dtype=jnp.float32)
    y_odd = jax.block_until_ready(tongue_segmentation_forward(x_odd, force_kernel=True))
    assert y_odd.shape == x_odd.shape and y_odd.dtype == x_odd.dtype
    assert bool(jnp.all(y_odd == x_odd))

    print("KERNEL_OK")
</pallas_src>

<mosaic_0001>
module attributes {stable_mosaic.version = 11 : i64} {
  func.func @_identity_kernel(%arg0: i32, %arg1: memref<1x2048xf32, #tpu.memory_space<vmem>>, %arg2: memref<1x2048xf32, #tpu.memory_space<vmem>>) attributes {dimension_semantics = [#tpu.dimension_semantics<parallel>], iteration_bounds = array<i64: 1>, scalar_prefetch = 0 : i64, scratch_operands = 0 : i64, tpu.core_type = #tpu.core_type<tc>, window_params = [{transform_indices = @transform_0, window_bounds = array<i64: 1, 2048>}, {transform_indices = @transform_1, window_bounds = array<i64: 1, 2048>}]} {
    %c0 = arith.constant 0 : index
    %c0_0 = arith.constant 0 : index
    %0 = vector.load %arg1[%c0, %c0_0] : memref<1x2048xf32, #tpu.memory_space<vmem>>, vector<1x2048xf32>
    %c0_1 = arith.constant 0 : index
    %c0_2 = arith.constant 0 : index
    %1 = vector.load %arg2[%c0_1, %c0_2] : memref<1x2048xf32, #tpu.memory_space<vmem>>, vector<1x2048xf32>
    tpu.vector_store %arg2[%c0_1, %c0_2], %0 {strides = array<i32>} : memref<1x2048xf32, #tpu.memory_space<vmem>>, vector<1x2048xf32>,
    return
  }
  func.func @transform_0(%arg0: i32) -> (i32, i32) {
    %c0_i32 = arith.constant 0 : i32
    %c0_i32_0 = arith.constant 0 : i32
    return %arg0, %c0_i32 : i32, i32
  }
  func.func @transform_1(%arg0: i32) -> (i32, i32) {
    %c0_i32 = arith.constant 0 : i32
    %c0_i32_0 = arith.constant 0 : i32
    return %arg0, %c0_i32 : i32, i32
  }
}

</mosaic_0001>

<llo_original>
// kernel: tpu_custom_call.1
$region0: #{tpu_custom_call.1}
  #allocation0 [shape = 'u32[]', space=smem, size = 0x4, offset = 0x4, fixed_abs, tag = 'smem constant byte address 0x4 - core index']
  #allocation1 [shape = 'u32[144,128]{1,0:T(1,128)}', space=vmem, size = 0x12000, scoped, tag = 'internal scratch']
  %s0 = inlined_call_operand.hbm [shape: f32[1,2048], index: 0, kind: input, shape index: {}]
  %s1 = inlined_call_operand.hbm [shape: f32[1,2048], index: 1, kind: output, shape index: {}]
  %s2 = sld [smem:[#allocation0]]
  $region18: #{tpu_custom_call.1} parent=0
    _
  %s4 = ssub.s32 1, %s2
  %s5 = scalar_select 0, %s4, %s2
  $region1: #{tpu_custom_call.1} parent=0
    #allocation2 [shape = 'u8[8192]{0}', space=vmem, size = 0x2000, scoped, tag = 'input window, operand 0, single buffered']
    #allocation3 [shape = 's32[1]{0}', space=sflag, size = 0x4, scoped, tag = 'scoped memory for tpu_custom_call.1']
    #allocation4 [shape = 's32[1]{0}', space=sflag, size = 0x4, scoped, tag = 'scoped memory for tpu_custom_call.1']
    #allocation5 [shape = 'u8[8192]{0}', space=vmem, size = 0x2000, scoped, tag = 'output window, operand 0, single buffered']
    %6 = vsyncpa [#allocation3], 0
    %7 = vsyncpa [#allocation4], 0
    // Predicated region
    $region2: #{tpu_custom_call.1} parent=1 // pred_check
      _
    $region3: #{tpu_custom_call.1} parent=1 // pred_check_branch
      %9 = sbr.rel (0) target = $region5
    $region4: #{tpu_custom_call.1} parent=1 // pred_region
      %s11 = ssub.s32 256, 256
      %12 = vsyncadd [#allocation3], %s11
      %s14 = sshll.u32 [#allocation2], 4
      %s15 = int_to_ptr.vmem [resolvable:$true] %s14
      %17 = dma.hbm_to_vmem [thread:$0]  %s0, 256, %s15, [#allocation3]
    $region5: #{tpu_custom_call.1} parent=1 // pred_fallthru
      _
    // Predicated region
    $region6: #{tpu_custom_call.1} parent=1 // pred_check
      _
    $region7: #{tpu_custom_call.1} parent=1 // pred_check_branch
      %19 = sbr.rel (0) target = $region9
    $region8: #{tpu_custom_call.1} parent=1 // pred_region
      %20 = dma.done [#allocation3], 256
    $region9: #{tpu_custom_call.1} parent=1 // pred_fallthru
      _
    %v21 = vld [vmem:[#allocation2] sm:$0xff]
    %v22 = vld [vmem:[#allocation2 + $0x8] sm:$0xff]
    %23 = vst [vmem:[#allocation5] sm:$0xff] %v21
    %24 = vst [vmem:[#allocation5 + $0x8] sm:$0xff] %v22
    // Predicated region
    $region10: #{tpu_custom_call.1} parent=1 // pred_check
      _
    $region11: #{tpu_custom_call.1} parent=1 // pred_check_branch
      %26 = sbr.rel (0) target = $region13
    $region12: #{tpu_custom_call.1} parent=1 // pred_region
      %s28 = ssub.s32 256, 256
      %29 = vsyncadd [#allocation4], %s28
      %s31 = sshll.u32 [#allocation5], 4
      %s32 = int_to_ptr.vmem [resolvable:$true] %s31
      %34 = dma.vmem_to_hbm [thread:$0]  %s32, 256, %s1, [#allocation4]
    $region13: #{tpu_custom_call.1} parent=1 // pred_fallthru
      _
    // Predicated region
    $region14: #{tpu_custom_call.1} parent=1 // pred_check
      _
    $region15: #{tpu_custom_call.1} parent=1 // pred_check_branch
      %36 = sbr.rel (0) target = $region17
    $region16: #{tpu_custom_call.1} parent=1 // pred_region
      %37 = dma.done [#allocation4], 256
    $region17: #{tpu_custom_call.1} parent=1 // pred_fallthru
      _
    %38 = vsyncpa [#allocation3], 1
    %39 = vsyncpa [#allocation4], 1

</llo_original>
